<compile_context>
chip_gen: v5e
topology: v5e:2x2
jax: 0.10.0
libtpu: 0.0.40
codegen_flags: <defaults>
</compile_context>

<pallas_src>
import functools

import jax
import jax.numpy as jnp
from jax import lax
from jax.experimental import pallas as pl
from jax.experimental.pallas import tpu as pltpu

BN_EPS = 1e-5
_LANE = 128
_VMEM_LIMIT_BYTES = 48 * 1024 * 1024   # explicit scoped-VMEM limit (OK on v5e/v6e/v7x)
_VMEM_TILE_BUDGET = 20 * 1024 * 1024   # target working set for double-buffered tiles


def _round_up(a, b):
    return (a + b - 1) // b * b


def _cdiv(a, b):
    return -(-a // b)


def _sublane(dtype):
    # sublane packing multiple: 8 for f32, 16 for bf16
    return 8 * (4 // jnp.dtype(dtype).itemsize)


def _pad2d(a, rows, cols):
    r, c = a.shape
    return jnp.pad(a, ((0, rows - r), (0, cols - c)))


def _choose_tm(m, *, sublane, per_row_bytes, fixed_bytes,
               budget_bytes=_VMEM_TILE_BUDGET, max_tm=1024):
    """Largest M tile (multiple of the dtype sublane packing) whose
    double-buffered working set fits the VMEM budget; prefers >= 2 evenly
    sized tiles so the "parallel" M axis shards across both v7x TCs."""
    m_up = _round_up(max(m, sublane), sublane)
    avail = max(budget_bytes - fixed_bytes, sublane * per_row_bytes)
    tm = min(max_tm, avail // max(per_row_bytes, 1))
    tm = max(tm // sublane * sublane, sublane)
    tm = min(tm, m_up)
    n_tiles = _cdiv(m_up, tm)
    if n_tiles == 1 and m_up >= 2 * sublane:
        tm = _round_up(_cdiv(m_up, 2), sublane)
    elif n_tiles > 1 and n_tiles % 2 == 1:
        tm = _round_up(_cdiv(m_up, n_tiles + 1), sublane)
    n_tiles = _cdiv(m_up, tm)
    return tm, n_tiles * tm


# --------------------------------------------------------------------------
# Pass 1 kernel: tiled MXU matmul(s) + per-tile partial BatchNorm statistics.
# Each "branch" is an independent (x_tile @ w) matmul sharing the same M
# tiling (conv2 and its fused 1x1 downsample conv).
# --------------------------------------------------------------------------
def _mm_stats_kernel(*refs, n_branches):
    in_refs = refs[:2 * n_branches]
    out_refs = refs[2 * n_branches:]
    for b in range(n_branches):
        x_ref, w_ref = in_refs[2 * b], in_refs[2 * b + 1]
        y_ref, s_ref = out_refs[2 * b], out_refs[2 * b + 1]
        # MXU matmul, f32 accumulation.
        y = jnp.dot(x_ref[...], w_ref[...], preferred_element_type=jnp.float32)
        # Per-tile partial statistics from the f32 accumulator (exact BN),
        # written directly into the stats block (no concat temporary).
        s_ref[0, 0:1, :] = jnp.sum(y, axis=0, keepdims=True)
        s_ref[0, 1:2, :] = jnp.sum(y * y, axis=0, keepdims=True)
        # Conv output stored in the (possibly bf16) intermediate dtype.
        y_ref[...] = y.astype(y_ref.dtype)


# --------------------------------------------------------------------------
# Pass 2 kernel: y*scale + shift (+ residual) -> ReLU, tiled over M.
#   residual_mode: "none" | "raw" (precomputed tile) | "bn" (fused 1x1-conv
#   downsample output normalized with its own scale/shift).
# --------------------------------------------------------------------------
def _bn_apply_kernel(*refs, residual_mode, apply_relu):
    if residual_mode == "bn":
        y_ref, sc_ref, sh_ref, yd_ref, scd_ref, shd_ref, o_ref = refs
    elif residual_mode == "raw":
        y_ref, sc_ref, sh_ref, r_ref, o_ref = refs
    else:
        y_ref, sc_ref, sh_ref, o_ref = refs

    out = y_ref[...].astype(jnp.float32) * sc_ref[...] + sh_ref[...]
    if residual_mode == "bn":
        out = out + (yd_ref[...].astype(jnp.float32) * scd_ref[...] + shd_ref[...])
    elif residual_mode == "raw":
        out = out + r_ref[...].astype(jnp.float32)
    if apply_relu:
        out = jnp.maximum(out, 0.0)
    o_ref[...] = out.astype(o_ref.dtype)


# --------------------------------------------------------------------------
# pallas_call wrappers
# --------------------------------------------------------------------------
def _pass1_matmul_stats(branches, *, tm, y_dtype):
    """branches: list of (x2d (M_pad, Kp), w2d (Kp, Cp)).  Returns
    [y0, partial_stats0, y1, partial_stats1, ...]."""
    m_pad = branches[0][0].shape[0]
    c_pad = branches[0][1].shape[1]
    n_tiles = m_pad // tm
    y_bytes = jnp.dtype(y_dtype).itemsize

    inputs, in_specs, out_specs, out_shapes = [], [], [], []
    flops, bytes_acc = 0, 0
    for x2d, w2d in branches:
        k_pad = x2d.shape[1]
        inputs += [x2d, w2d]
        in_specs += [
            pl.BlockSpec((tm, k_pad), lambda i: (i, 0)),
            pl.BlockSpec((k_pad, c_pad), lambda i: (0, 0)),
        ]
        out_specs += [
            pl.BlockSpec((tm, c_pad), lambda i: (i, 0)),
            pl.BlockSpec((1, 2, c_pad), lambda i: (i, 0, 0)),
        ]
        out_shapes += [
            jax.ShapeDtypeStruct((m_pad, c_pad), y_dtype),
            jax.ShapeDtypeStruct((n_tiles, 2, c_pad), jnp.float32),
        ]
        flops += 2 * m_pad * k_pad * c_pad
        bytes_acc += (int(x2d.size) * x2d.dtype.itemsize
                      + int(w2d.size) * w2d.dtype.itemsize
                      + m_pad * c_pad * y_bytes + n_tiles * 2 * c_pad * 4)

    kernel = functools.partial(_mm_stats_kernel, n_branches=len(branches))
    return pl.pallas_call(
        kernel,
        grid=(n_tiles,),
        in_specs=in_specs,
        out_specs=out_specs,
        out_shape=out_shapes,
        compiler_params=pltpu.CompilerParams(
            dimension_semantics=("parallel",),
            vmem_limit_bytes=_VMEM_LIMIT_BYTES),
        cost_estimate=pl.CostEstimate(
            flops=int(flops), transcendentals=0, bytes_accessed=int(bytes_acc)),
    )(*inputs)


def _pass2_bn_apply(y, scale, shift, *, residual=None, residual_bn=None,
                    tm, apply_relu=True, out_dtype=jnp.float32):
    m_pad, c_pad = y.shape
    n_tiles = m_pad // tm
    row_spec = pl.BlockSpec((tm, c_pad), lambda i: (i, 0))
    vec_spec = pl.BlockSpec((1, c_pad), lambda i: (0, 0))

    inputs = [y, scale, shift]
    in_specs = [row_spec, vec_spec, vec_spec]
    if residual_bn is not None:
        mode = "bn"
        yd, scd, shd = residual_bn
        inputs += [yd, scd, shd]
        in_specs += [row_spec, vec_spec, vec_spec]
    elif residual is not None:
        mode = "raw"
        inputs.append(residual)
        in_specs.append(row_spec)
    else:
        mode = "none"

    bytes_acc = (sum(int(a.size) * a.dtype.itemsize for a in inputs)
                 + m_pad * c_pad * jnp.dtype(out_dtype).itemsize)
    kernel = functools.partial(_bn_apply_kernel, residual_mode=mode,
                               apply_relu=apply_relu)
    return pl.pallas_call(
        kernel,
        grid=(n_tiles,),
        in_specs=in_specs,
        out_specs=row_spec,
        out_shape=jax.ShapeDtypeStruct((m_pad, c_pad), out_dtype),
        compiler_params=pltpu.CompilerParams(
            dimension_semantics=("parallel",),
            vmem_limit_bytes=_VMEM_LIMIT_BYTES),
        cost_estimate=pl.CostEstimate(
            flops=int(4 * m_pad * c_pad * (2 if mode == "bn" else 1)),
            transcendentals=0, bytes_accessed=int(bytes_acc)),
    )(*inputs)


def _scale_shift(partial_stats, gamma, beta, m, c_pad):
    """Exact global batch stats from per-tile partials -> per-channel
    scale/shift (tiny per-channel vectors, computed in plain JAX)."""
    stats = jnp.sum(partial_stats, axis=0)               # (2, c_pad)
    mean = stats[0] / m
    var = jnp.maximum(stats[1] / m - mean * mean, 0.0)   # biased variance
    g = jnp.pad(gamma.astype(jnp.float32), (0, c_pad - gamma.shape[0]))
    b = jnp.pad(beta.astype(jnp.float32), (0, c_pad - beta.shape[0]))
    scale = g * lax.rsqrt(var + BN_EPS)
    shift = b - mean * scale
    return scale.reshape(1, c_pad), shift.reshape(1, c_pad)


# --------------------------------------------------------------------------
# Glue: im2col / weight reshaping (layout plumbing in plain JAX)
# --------------------------------------------------------------------------
def _im2col_3x3(x_nhwc, stride, dtype):
    n, h, w, c = x_nhwc.shape
    ho = (h + 2 - 3) // stride + 1
    wo = (w + 2 - 3) // stride + 1
    xp = jnp.pad(x_nhwc.astype(dtype), ((0, 0), (1, 1), (1, 1), (0, 0)))
    cols = []
    for ky in range(3):
        for kx in range(3):
            cols.append(xp[:, ky:ky + (ho - 1) * stride + 1:stride,
                              kx:kx + (wo - 1) * stride + 1:stride, :])
    col = jnp.stack(cols, axis=3)                        # (n, ho, wo, 9, c)
    return col.reshape(n * ho * wo, 9 * c), (ho, wo)


def _prep_weight(w_oihw, k_pad, c_pad, dtype):
    o, i, kh, kw = w_oihw.shape
    w2d = jnp.transpose(w_oihw, (2, 3, 1, 0)).reshape(kh * kw * i, o)
    return _pad2d(w2d.astype(dtype), k_pad, c_pad)


# --------------------------------------------------------------------------
# BasicBlock forward — NHWC-native core + NCHW wrapper (module interface).
# --------------------------------------------------------------------------
def basic_block_forward_nhwc(x_nhwc, params, *, stride, downsample,
                             mxu_dtype=jnp.bfloat16, out_dtype=jnp.float32):
    x = x_nhwc.astype(jnp.float32)
    n, h, w, cin = x.shape
    planes = params["w1"].shape[0]
    c_pad = _round_up(planes, _LANE)        # lane-dense output channels
    sub = _sublane(mxu_dtype)
    inter_dtype = mxu_dtype                 # intermediates at MXU precision
    mxu_b = jnp.dtype(mxu_dtype).itemsize

    ho = (h - 1) // stride + 1
    wo = (w - 1) // stride + 1
    m = n * ho * wo

    # K padded only to the sublane multiple (blocks are full-extent in K).
    k1_pad = _round_up(9 * cin, sub)
    k2_pad = _round_up(9 * planes, sub)
    kd_pad = _round_up(cin, sub) if downsample else 0

    # VMEM-budget-aware M tile shared by every pass of the block.
    n_br2 = 1 + int(downsample)
    per_row = max(
        2 * (k1_pad * mxu_b + c_pad * mxu_b),                     # conv1 pass 1
        2 * ((k2_pad + kd_pad) * mxu_b + n_br2 * c_pad * mxu_b),  # conv2 (+ds)
        2 * ((n_br2 + 1) * c_pad * mxu_b + c_pad * 4),            # pass 2
    )
    fixed = 2 * max(k1_pad, k2_pad + kd_pad) * c_pad * mxu_b + (2 << 20)
    tm, m_pad = _choose_tm(m, sublane=sub, per_row_bytes=per_row,
                           fixed_bytes=fixed)

    # ---- conv1 (3x3, stride) + bn1 + relu --------------------------------
    col1, (ho, wo) = _im2col_3x3(x, stride, mxu_dtype)
    col1 = _pad2d(col1, m_pad, k1_pad)
    w1 = _prep_weight(params["w1"], k1_pad, c_pad, mxu_dtype)

    y1, st1 = _pass1_matmul_stats([(col1, w1)], tm=tm, y_dtype=inter_dtype)
    sc1, sh1 = _scale_shift(st1, params["g1"], params["b1"], m, c_pad)
    # out1 emitted in the intermediate dtype -> conv2's im2col needs no cast.
    out1 = _pass2_bn_apply(y1, sc1, sh1, tm=tm, apply_relu=True,
                           out_dtype=inter_dtype)
    out1_sp = out1[:m, :planes].reshape(n, ho, wo, planes)

    # ---- conv2 (3x3, s=1) + bn2 [+ fused 1x1 downsample + bn_ds]
    #      + residual add + relu ------------------------------------------
    col2, _ = _im2col_3x3(out1_sp, 1, mxu_dtype)
    col2 = _pad2d(col2, m_pad, k2_pad)
    w2 = _prep_weight(params["w2"], k2_pad, c_pad, mxu_dtype)
    branches = [(col2, w2)]

    if downsample:
        xs = x[:, ::stride, ::stride, :].reshape(m, cin).astype(mxu_dtype)
        xs = _pad2d(xs, m_pad, kd_pad)
        wds = _prep_weight(params["wds"], kd_pad, c_pad, mxu_dtype)
        branches.append((xs, wds))

        y2, st2, yds, stds = _pass1_matmul_stats(branches, tm=tm,
                                                 y_dtype=inter_dtype)
        sc2, sh2 = _scale_shift(st2, params["g2"], params["b2"], m, c_pad)
        scd, shd = _scale_shift(stds, params["gds"], params["bds"], m, c_pad)
        out2 = _pass2_bn_apply(y2, sc2, sh2, residual_bn=(yds, scd, shd),
                               tm=tm, apply_relu=True, out_dtype=out_dtype)
    else:
        assert stride == 1 and cin == planes, (
            "identity residual requires stride=1 and inplanes == planes")
        y2, st2 = _pass1_matmul_stats(branches, tm=tm, y_dtype=inter_dtype)
        sc2, sh2 = _scale_shift(st2, params["g2"], params["b2"], m, c_pad)
        res = _pad2d(x.reshape(m, cin).astype(inter_dtype), m_pad, c_pad)
        out2 = _pass2_bn_apply(y2, sc2, sh2, residual=res,
                               tm=tm, apply_relu=True, out_dtype=out_dtype)

    return out2[:m, :planes].reshape(n, ho, wo, planes)


def basic_block_forward(x_nchw, params, *, stride, downsample,
                        mxu_dtype=jnp.bfloat16):
    """NCHW wrapper matching the PyTorch module interface.  When chaining
    blocks, prefer basic_block_forward_nhwc to avoid per-block transposes."""
    x = jnp.transpose(x_nchw, (0, 2, 3, 1))
    out = basic_block_forward_nhwc(x, params, stride=stride,
                                   downsample=downsample, mxu_dtype=mxu_dtype)
    return jnp.transpose(out, (0, 3, 1, 2))


# --------------------------------------------------------------------------
# Pure-JAX reference (correctness check only)
# --------------------------------------------------------------------------
def _ref_basic_block(x, p, *, stride, downsample):
    def conv(x, w, s, pad):
        return lax.conv_general_dilated(
            x, w, (s, s), [(pad, pad), (pad, pad)],
            dimension_numbers=("NCHW", "OIHW", "NCHW"),
            precision=lax.Precision.HIGHEST)

    def bn(y, g, b):
        mu = y.mean(axis=(0, 2, 3), keepdims=True)
        var = ((y - mu) ** 2).mean(axis=(0, 2, 3), keepdims=True)
        return ((y - mu) * lax.rsqrt(var + BN_EPS)
                * g.reshape(1, -1, 1, 1) + b.reshape(1, -1, 1, 1))

    out = jax.nn.relu(bn(conv(x, p["w1"], stride, 1), p["g1"], p["b1"]))
    out = bn(conv(out, p["w2"], 1, 1), p["g2"], p["b2"])
    res = x
    if downsample:
        res = bn(conv(x, p["wds"], stride, 0), p["gds"], p["bds"])
    return jax.nn.relu(out + res)


# --------------------------------------------------------------------------
if __name__ == "__main__":
    # Config 1: inplanes=4, planes=8, stride=2, downsample=True
    N, Cin, H, W = 2, 4, 16, 16
    planes, stride, downsample = 8, 2, True

    key = jax.random.PRNGKey(0)
    k = jax.random.split(key, 16)
    params = {
        # conv weights in PyTorch layout (Cout, Cin, kh, kw)
        "w1": 0.1 * jax.random.normal(k[0], (planes, Cin, 3, 3), jnp.float32),
        "w2": 0.1 * jax.random.normal(k[1], (planes, planes, 3, 3), jnp.float32),
        "wds": 0.1 * jax.random.normal(k[2], (planes, Cin, 1, 1), jnp.float32),
        # BatchNorm affine params (gamma, beta)
        "g1": 1.0 + 0.1 * jax.random.normal(k[3], (planes,), jnp.float32),
        "b1": 0.1 * jax.random.normal(k[4], (planes,), jnp.float32),
        "g2": 1.0 + 0.1 * jax.random.normal(k[5], (planes,), jnp.float32),
        "b2": 0.1 * jax.random.normal(k[6], (planes,), jnp.float32),
        "gds": 1.0 + 0.1 * jax.random.normal(k[7], (planes,), jnp.float32),
        "bds": 0.1 * jax.random.normal(k[8], (planes,), jnp.float32),
    }
    x = jax.random.normal(k[9], (N, Cin, H, W), jnp.float32)

    ref = jax.block_until_ready(
        _ref_basic_block(x, params, stride=stride, downsample=downsample))

    # 1) f32 MXU path: check of the exact training-mode BN + residual + ReLU
    #    semantics (tolerance accounts only for matmul precision defaults).
    out_f32 = jax.block_until_ready(
        basic_block_forward(x, params, stride=stride, downsample=downsample,
                            mxu_dtype=jnp.float32))
    assert out_f32.shape == ref.shape, (out_f32.shape, ref.shape)
    err32 = float(jnp.max(jnp.abs(out_f32 - ref)))
    assert jnp.allclose(out_f32, ref, atol=1e-2, rtol=1e-2), err32

    # 2) bf16 MXU path (default / perf config): looser tolerance because the
    #    matmul operands and intermediates are bf16 (semantics checked above).
    out_bf16 = jax.block_until_ready(
        basic_block_forward(x, params, stride=stride, downsample=downsample))
    assert out_bf16.shape == ref.shape, (out_bf16.shape, ref.shape)
    errbf = float(jnp.max(jnp.abs(out_bf16 - ref)))
    assert jnp.allclose(out_bf16, ref, atol=1e-1, rtol=1e-1), errbf

    # Config 2: identity-residual path (stride=1, no downsample).
    params_id = {
        "w1": 0.1 * jax.random.normal(k[10], (planes, planes, 3, 3), jnp.float32),
        "w2": 0.1 * jax.random.normal(k[11], (planes, planes, 3, 3), jnp.float32),
        "g1": 1.0 + 0.1 * jax.random.normal(k[12], (planes,), jnp.float32),
        "b1": 0.1 * jax.random.normal(k[13], (planes,), jnp.float32),
        "g2": 1.0 + 0.1 * jax.random.normal(k[14], (planes,), jnp.float32),
        "b2": 0.1 * jax.random.normal(k[15], (planes,), jnp.float32),
    }
    x_id = jax.random.normal(k[9], (N, planes, H, W), jnp.float32)
    ref_id = jax.block_until_ready(
        _ref_basic_block(x_id, params_id, stride=1, downsample=False))
    out_id = jax.block_until_ready(
        basic_block_forward(x_id, params_id, stride=1, downsample=False))
    assert out_id.shape == ref_id.shape, (out_id.shape, ref_id.shape)
    errid = float(jnp.max(jnp.abs(out_id - ref_id)))
    assert jnp.allclose(out_id, ref_id, atol=1e-1, rtol=1e-1), errid

    print("KERNEL_OK")
</pallas_src>

<mosaic_0001>
module attributes {stable_mosaic.version = 11 : i64} {
  func.func @_mm_stats_kernel(%arg0: i32, %arg1: memref<64x40xf32, #tpu.memory_space<vmem>>, %arg2: memref<40x128xf32, #tpu.memory_space<vmem>>, %arg3: memref<64x128xf32, #tpu.memory_space<vmem>>, %arg4: memref<1x2x128xf32, #tpu.memory_space<vmem>>) attributes {dimension_semantics = [#tpu.dimension_semantics<parallel>], iteration_bounds = array<i64: 2>, scalar_prefetch = 0 : i64, scratch_operands = 0 : i64, tpu.core_type = #tpu.core_type<tc>, window_params = [{transform_indices = @transform_0, window_bounds = array<i64: 64, 40>}, {pipeline_mode = #tpu.pipeline_mode<synchronous>, transform_indices = @transform_1, window_bounds = array<i64: 40, 128>}, {transform_indices = @transform_2, window_bounds = array<i64: 64, 128>}, {transform_indices = @transform_3, window_bounds = array<i64: 1, 2, 128>}]} {
    %c0 = arith.constant 0 : index
    %c0_0 = arith.constant 0 : index
    %0 = vector.load %arg1[%c0, %c0_0] : memref<64x40xf32, #tpu.memory_space<vmem>>, vector<64x40xf32>
    %c0_1 = arith.constant 0 : index
    %c0_2 = arith.constant 0 : index
    %1 = vector.load %arg2[%c0_1, %c0_2] : memref<40x128xf32, #tpu.memory_space<vmem>>, vector<40x128xf32>
    %cst = arith.constant dense<0.000000e+00> : vector<64x128xf32>
    %2 = tpu.matmul %0, %1, %cst {dimension_numbers = #tpu.dot_dimension_numbers<[1], [0], [0], [1], [0, 0, 1, 1], [], []>} : vector<64x40xf32>, vector<40x128xf32>, vector<64x128xf32> -> vector<64x128xf32>
    %cst_3 = arith.constant dense<0.000000e+00> : vector<128xf32>
    %3 = vector.multi_reduction <add>, %2, %cst_3 [0] : vector<64x128xf32> to vector<128xf32>
    %4 = vector.shape_cast %3 : vector<128xf32> to vector<1x128xf32>
    %c0_4 = arith.constant 0 : index
    %c0_5 = arith.constant 0 : index
    %c0_6 = arith.constant 0 : index
    %5 = vector.load %arg4[%c0_4, %c0_5, %c0_6] : memref<1x2x128xf32, #tpu.memory_space<vmem>>, vector<1x1x128xf32>
    %6 = vector.shape_cast %5 : vector<1x1x128xf32> to vector<1x128xf32>
    %7 = vector.shape_cast %4 : vector<1x128xf32> to vector<1x1x128xf32>
    tpu.vector_store %arg4[%c0_4, %c0_5, %c0_6], %7 {strides = array<i32>} : memref<1x2x128xf32, #tpu.memory_space<vmem>>, vector<1x1x128xf32>,
    %8 = arith.mulf %2, %2 : vector<64x128xf32>
    %cst_7 = arith.constant dense<0.000000e+00> : vector<128xf32>
    %9 = vector.multi_reduction <add>, %8, %cst_7 [0] : vector<64x128xf32> to vector<128xf32>
    %10 = vector.shape_cast %9 : vector<128xf32> to vector<1x128xf32>
    %c0_8 = arith.constant 0 : index
    %c1 = arith.constant 1 : index
    %c0_9 = arith.constant 0 : index
    %11 = vector.load %arg4[%c0_8, %c1, %c0_9] : memref<1x2x128xf32, #tpu.memory_space<vmem>>, vector<1x1x128xf32>
    %12 = vector.shape_cast %11 : vector<1x1x128xf32> to vector<1x128xf32>
    %13 = vector.shape_cast %10 : vector<1x128xf32> to vector<1x1x128xf32>
    tpu.vector_store %arg4[%c0_8, %c1, %c0_9], %13 {strides = array<i32>} : memref<1x2x128xf32, #tpu.memory_space<vmem>>, vector<1x1x128xf32>,
    %c0_10 = arith.constant 0 : index
    %c0_11 = arith.constant 0 : index
    %14 = vector.load %arg3[%c0_10, %c0_11] : memref<64x128xf32, #tpu.memory_space<vmem>>, vector<64x128xf32>
    tpu.vector_store %arg3[%c0_10, %c0_11], %2 {strides = array<i32>} : memref<64x128xf32, #tpu.memory_space<vmem>>, vector<64x128xf32>,
    return
  }
  func.func @transform_0(%arg0: i32) -> (i32, i32) {
    %c0_i32 = arith.constant 0 : i32
    %c0_i32_0 = arith.constant 0 : i32
    return %arg0, %c0_i32 : i32, i32
  }
  func.func @transform_1(%arg0: i32) -> (i32, i32) {
    %c0_i32 = arith.constant 0 : i32
    %c0_i32_0 = arith.constant 0 : i32
    %c0_i32_1 = arith.constant 0 : i32
    return %c0_i32, %c0_i32_0 : i32, i32
  }
  func.func @transform_2(%arg0: i32) -> (i32, i32) {
    %c0_i32 = arith.constant 0 : i32
    %c0_i32_0 = arith.constant 0 : i32
    return %arg0, %c0_i32 : i32, i32
  }
  func.func @transform_3(%arg0: i32) -> (i32, i32, i32) {
    %c0_i32 = arith.constant 0 : i32
    %c0_i32_0 = arith.constant 0 : i32
    %c0_i32_1 = arith.constant 0 : i32
    return %arg0, %c0_i32, %c0_i32_0 : i32, i32, i32
  }
}

</mosaic_0001>

<llo_original>
// kernel: tpu_custom_call.1
$region0: #{tpu_custom_call.1}
  #allocation0 [shape = 'u32[]', space=smem, size = 0x4, offset = 0x4, fixed_abs, tag = 'smem constant byte address 0x4 - core index']
  #allocation1 [shape = 'u32[72,128]{1,0:T(1,128)}', space=vmem, size = 0x9000, scoped, tag = 'internal scratch']
  %s0 = inlined_call_operand.vmem [shape: f32[128,40], index: 0, kind: input, shape index: {}]
  %s1 = inlined_call_operand.vmem [shape: f32[40,128], index: 1, kind: input, shape index: {}]
  %s2 = inlined_call_operand.hbm [shape: f32[128,128], index: 2, kind: output, shape index: {0}]
  %s3 = inlined_call_operand.hbm [shape: f32[2,2,128], index: 3, kind: output, shape index: {1}]
  %4 = xla_tuple %s2, %s3
  %s5 = sld [smem:[#allocation0]]
  $region49: #{tpu_custom_call.1} parent=0
    _
  %s7 = ssub.s32 1, %s5
  %s8 = scalar_select 0, %s7, %s5
  $region1: #{tpu_custom_call.1} parent=0
    #allocation2 [shape = 'u8[65536]{0}', space=vmem, size = 0x10000, scoped, tag = 'output window, operand 0']
    #allocation3 [shape = 's32[2]{0}', space=sflag, size = 0x8, scoped, tag = 'scoped memory for tpu_custom_call.1']
    #allocation4 [shape = 'u8[2048]{0}', space=vmem, size = 0x800, scoped, tag = 'output window, operand 1']
    #allocation5 [shape = 's32[2]{0}', space=sflag, size = 0x8, scoped, tag = 'scoped memory for tpu_custom_call.1']
    %9 = vsyncpa [#allocation3], 0
    %s10 = scalar_lea.sflag [#allocation3], 1
    %11 = vsyncpa %s10, 0
    %12 = vsyncpa [#allocation5], 0
    %s13 = scalar_lea.sflag [#allocation5], 1
    %14 = vsyncpa %s13, 0
    loop: start=0, step=1, limit=4
    $region2: #{tpu_custom_call.1} parent=1 // loop_pre_header
      _
    $region3: #{tpu_custom_call.1} parent=1 // loop_header
      %s16 = sphi 0, %s20
      %p17 = scmp.ge.s32.totalorder %s16, 4
      %s26 = sphi 0, %s28
      %s29 = sphi 0, %s26
      %s30 = sphi 0, %s29
      %s46 = sphi 0, %s30
      %s50 = sphi 0, %s50
      %s52 = sphi 0, %s50
      %s53 = sphi 0, %s52
      %s67 = sphi 0, %s53
      %s73 = sphi 0, %s75
      %s76 = sphi 0, %s73
      %s77 = sphi 0, %s76
      %s93 = sphi 0, %s77
      %s99 = sphi 0, %s101
      %s102 = sphi 0, %s99
      %s103 = sphi 0, %s102
      %s119 = sphi 0, %s103
    $region4: #{tpu_custom_call.1} parent=1 // loop_header_branch
      %19 = sbr.rel (%p17) target = $region8
    $region5: #{tpu_custom_call.1} parent=1 // loop_body
      %s21 = ssub.s32 %s16, 1
      %s22 = ssub.s32 %s16, 2
      %s23 = sadd.s32 %s16, 1
      %s24 = ssub.s32 %s16, %s23
      %p25 = scmp.eq.s32.totalorder %s24, 0
      %s27 = sadd.s32 %s26, 1
      %s28 = scalar_select %p25, %s26, %s27
      %p31 = pneg %p25
      %p32 = scmp.eq.s32.totalorder %s16, 1
      %p33 = por %p31, %p32
      %p34 = scmp.ne.s32.totalorder %s26, %s29
      %p35 = scmp.eq.s32.totalorder %s16, 0
      %p36 = por %p34, %p35
      %p37 = scmp.ne.s32.totalorder %s26, %s29
      %p38 = scmp.eq.s32.totalorder %s21, 1
      %p39 = por %p37, %p38
      %p40 = scmp.ne.s32.totalorder %s29, %s30
      %p41 = scmp.eq.s32.totalorder %s21, 0
      %p42 = por %p40, %p41
      %p43 = scmp.ne.s32.totalorder %s29, %s30
      %p44 = scmp.eq.s32.totalorder %s22, 1
      %p45 = por %p43, %p44
      %p47 = scmp.ne.s32.totalorder %s30, %s46
      %p48 = scmp.eq.s32.totalorder %s22, 0
      %p49 = por %p47, %p48
      %s51 = sadd.s32 %s50, 1
      %p54 = scmp.eq.s32.totalorder %s16, 1
      %p55 = scmp.ne.s32.totalorder %s50, %s52
      %p56 = scmp.eq.s32.totalorder %s16, 0
      %p57 = por %p55, %p56
      %p58 = scmp.ne.s32.totalorder %s50, %s52
      %p59 = scmp.eq.s32.totalorder %s21, 1
      %p60 = por %p58, %p59
      %p61 = scmp.ne.s32.totalorder %s52, %s53
      %p62 = scmp.eq.s32.totalorder %s21, 0
      %p63 = por %p61, %p62
      %p64 = scmp.ne.s32.totalorder %s52, %s53
      %p65 = scmp.eq.s32.totalorder %s22, 1
      %p66 = por %p64, %p65
      %p68 = scmp.ne.s32.totalorder %s53, %s67
      %p69 = scmp.eq.s32.totalorder %s22, 0
      %p70 = por %p68, %p69
      %s71 = ssub.s32 %s16, %s23
      %p72 = scmp.eq.s32.totalorder %s71, 0
      %s74 = sadd.s32 %s73, 1
      %s75 = scalar_select %p72, %s73, %s74
      %p78 = pneg %p72
      %p79 = scmp.eq.s32.totalorder %s16, 1
      %p80 = por %p78, %p79
      %p81 = scmp.ne.s32.totalorder %s73, %s76
      %p82 = scmp.eq.s32.totalorder %s16, 0
      %p83 = por %p81, %p82
      %p84 = scmp.ne.s32.totalorder %s73, %s76
      %p85 = scmp.eq.s32.totalorder %s21, 1
      %p86 = por %p84, %p85
      %p87 = scmp.ne.s32.totalorder %s76, %s77
      %p88 = scmp.eq.s32.totalorder %s21, 0
      %p89 = por %p87, %p88
      %p90 = scmp.ne.s32.totalorder %s76, %s77
      %p91 = scmp.eq.s32.totalorder %s22, 1
      %p92 = por %p90, %p91
      %p94 = scmp.ne.s32.totalorder %s77, %s93
      %p95 = scmp.eq.s32.totalorder %s22, 0
      %p96 = por %p94, %p95
      %s97 = ssub.s32 %s16, %s23
      %p98 = scmp.eq.s32.totalorder %s97, 0
      %s100 = sadd.s32 %s99, 1
      %s101 = scalar_select %p98, %s99, %s100
      %p104 = pneg %p98
      %p105 = scmp.eq.s32.totalorder %s16, 1
      %p106 = por %p104, %p105
      %p107 = scmp.ne.s32.totalorder %s99, %s102
      %p108 = scmp.eq.s32.totalorder %s16, 0
      %p109 = por %p107, %p108
      %p110 = scmp.ne.s32.totalorder %s99, %s102
      %p111 = scmp.eq.s32.totalorder %s21, 1
      %p112 = por %p110, %p111
      %p113 = scmp.ne.s32.totalorder %s102, %s103
      %p114 = scmp.eq.s32.totalorder %s21, 0
      %p115 = por %p113, %p114
      %p116 = scmp.ne.s32.totalorder %s102, %s103
      %p117 = scmp.eq.s32.totalorder %s22, 1
      %p118 = por %p116, %p117
      %p120 = scmp.ne.s32.totalorder %s103, %s119
      %p121 = scmp.eq.s32.totalorder %s22, 0
      %p122 = por %p120, %p121
      %p123 = scmp.le.s32.totalorder 1, %s16
      %p124 = scmp.lt.s32.totalorder %s16, 3
      %p125 = pnand %p123, %p124
      %p126 = pneg %p125
      // Predicated region
      $region9: #{tpu_custom_call.1} parent=5 // pred_check
        _
      $region10: #{tpu_custom_call.1} parent=5 // pred_check_branch
        %128 = sbr.rel (%p125) target = $region12
      $region11: #{tpu_custom_call.1} parent=5 // pred_region
        %s129 = ssub.s32 %s16, 1
        // Predicated region
        $region13: #{tpu_custom_call.1} parent=11 // pred_check
          %p130 = pneg %p63
        $region14: #{tpu_custom_call.1} parent=11 // pred_check_branch
          %132 = sbr.rel (%p130) target = $region16
        $region15: #{tpu_custom_call.1} parent=11 // pred_region
          _
        $region16: #{tpu_custom_call.1} parent=11 // pred_fallthru
          _
      $region12: #{tpu_custom_call.1} parent=5 // pred_fallthru
        _
      %p133 = scmp.lt.s32.totalorder %s16, 2
      // Predicated region
      $region17: #{tpu_custom_call.1} parent=5 // pred_check
        %p134 = pneg %p133
      $region18: #{tpu_custom_call.1} parent=5 // pred_check_branch
        %136 = sbr.rel (%p134) target = $region20
      $region19: #{tpu_custom_call.1} parent=5 // pred_region
        // Predicated region
        $region21: #{tpu_custom_call.1} parent=19 // pred_check
          %p137 = pneg %p36
        $region22: #{tpu_custom_call.1} parent=19 // pred_check_branch
          %139 = sbr.rel (%p137) target = $region24
        $region23: #{tpu_custom_call.1} parent=19 // pred_region
          %s140 = smul.u32 8, %s16
          %p141 = scmp.lt.s32.totalorder %s140, 15
          %s142 = scalar_select %p141, %s140, 15
          %s143 = smul.addr %s142, 8
          %s144 = scalar_lea.vmem %s0, %s143
          %s145 = smul.u32 8, %s16
        $region24: #{tpu_custom_call.1} parent=19 // pred_fallthru
          _
      $region20: #{tpu_custom_call.1} parent=5 // pred_fallthru
        _
      %p146 = scmp.le.s32.totalorder 1, %s16
      %p147 = scmp.lt.s32.totalorder %s16, 3
      %p148 = pnand %p146, %p147
      %p149 = pneg %p148
      // Predicated region
      $region25: #{tpu_custom_call.1} parent=5 // pred_check
        _
      $region26: #{tpu_custom_call.1} parent=5 // pred_check_branch
        %151 = sbr.rel (%p148) target = $region28
      $region27: #{tpu_custom_call.1} parent=5 // pred_region
        %s152 = ssub.s32 %s16, 1
        %s153 = smul.u32 8, %s21
        %p154 = scmp.lt.s32.totalorder %s153, 15
        %s155 = scalar_select %p154, %s153, 15
        %s156 = smul.addr %s155, 8
        %s157 = scalar_lea.vmem %s0, %s156
        %p158 = pneg %p42
        %p159 = pneg %p39
        %p160 = pneg %p63
        %p161 = pneg %p60
        %p162 = pneg %p89
        %p163 = pneg %p86
        %s164 = sand.u32 %s76, 1
        %s165 = scalar_lea.sflag [#allocation3], %s164
        %s166 = sand.u32 %s76, 1
        %s167 = smul.addr %s166, 64
        %s168 = scalar_lea.vmem [#allocation2], %s167
        %p169 = pneg %p115
        %p170 = pneg %p112
        %s171 = sand.u32 %s102, 1
        %s172 = scalar_lea.sflag [#allocation5], %s171
        %s173 = sand.u32 %s102, 1
        %s174 = smul.addr %s173, 2
        %s175 = scalar_lea.vmem [#allocation4], %s174
        %s176 = smul.u32 8, %s21
        %p177 = scmp.lt.s32.totalorder %s176, 15
        %s178 = scalar_select %p177, %s176, 15
        %s179 = smul.addr %s178, 8
        %s180 = scalar_lea.vmem %s0, %s179
        %s181 = smul.u32 8, %s21
        %s182 = smul.u32 8, %s21
        %v183 = vld [vmem:[%s180] sm:$0xff]
        %v184 = vld [vmem:[%s180 + $0x8] sm:$0xff]
        %v185 = vld [vmem:[%s180 + $0x10] sm:$0xff]
        %v186 = vld [vmem:[%s180 + $0x18] sm:$0xff]
        %v187 = vld [vmem:[%s180 + $0x20] sm:$0xff]
        %v188 = vld [vmem:[%s180 + $0x28] sm:$0xff]
        %v189 = vld [vmem:[%s180 + $0x30] sm:$0xff]
        %v190 = vld [vmem:[%s180 + $0x38] sm:$0xff]
        %v191 = vld [vmem:[%s1] sm:$0xff]
        %v192 = vld [vmem:[%s1 + $0x8] sm:$0xff]
        %v193 = vld [vmem:[%s1 + $0x10] sm:$0xff]
        %v194 = vld [vmem:[%s1 + $0x18] sm:$0xff]
        %v195 = vld [vmem:[%s1 + $0x20] sm:$0xff]
        %vm196 = vcmask 326656
        %v198 = vsel %vm196, %v183, 0
        %v201 = vsel %vm196, %v184, 0
        %v204 = vsel %vm196, %v185, 0
        %v207 = vsel %vm196, %v186, 0
        %v210 = vsel %vm196, %v187, 0
        %v213 = vsel %vm196, %v188, 0
        %v216 = vsel %vm196, %v189, 0
        %v219 = vsel %vm196, %v190, 0
        %221 = vmatpush.msra.mxu0 0.0
        %222 = vmatpush.msra.mxu0 0.0
        %223 = vmatpush.msra.mxu0 0.0
        %224 = vmatpush.msra.mxu0 0.0
        %225 = vmatpush.msra.mxu0 0.0
        %226 = vmatpush.msra.mxu0 0.0
        %227 = vmatpush.msra.mxu0 0.0
        %228 = vmatpush.msra.mxu0 0.0
        %229 = vmatpush.msra.mxu0 0.0
        %230 = vmatpush.msra.mxu0 0.0
        %231 = vmatpush.msra.mxu0 0.0
        %232 = vmatpush.msra.mxu0 %v195
        %233 = vmatpush.msra.mxu0 %v194
        %234 = vmatpush.msra.mxu0 %v193
        %235 = vmatpush.msra.mxu0 %v192
        %236 = vmatpush.msra.mxu0 %v191
        %237 = vmatmul.f32.gmra.mxu0 %v198
        %v238 = vpop.f32.mrf.mxu0
        %v239 = vadd.f32 0.0, %v238
        %240 = vmatmul.f32.gmra.mxu0 %v201
        %v241 = vpop.f32.mrf.mxu0
        %v242 = vadd.f32 0.0, %v241
        %243 = vmatmul.f32.gmra.mxu0 %v204
        %v244 = vpop.f32.mrf.mxu0
        %v245 = vadd.f32 0.0, %v244
        %246 = vmatmul.f32.gmra.mxu0 %v207
        %v247 = vpop.f32.mrf.mxu0
        %v248 = vadd.f32 0.0, %v247
        %249 = vmatmul.f32.gmra.mxu0 %v210
        %v250 = vpop.f32.mrf.mxu0
        %v251 = vadd.f32 0.0, %v250
        %252 = vmatmul.f32.gmra.mxu0 %v213
        %v253 = vpop.f32.mrf.mxu0
        %v254 = vadd.f32 0.0, %v253
        %255 = vmatmul.f32.gmra.mxu0 %v216
        %v256 = vpop.f32.mrf.mxu0
        %v257 = vadd.f32 0.0, %v256
        %258 = vmatmul.f32.gmra.mxu0 %v219
        %v259 = vpop.f32.mrf.mxu0
        %v260 = vadd.f32 0.0, %v259
        %261 = vdwg.mxu0
        %v262 = vadd.f32 %v239, %v242
        %v263 = vadd.f32 %v262, %v245
        %v264 = vadd.f32 %v263, %v248
        %v265 = vadd.f32 %v264, %v251
        %v266 = vadd.f32 %v265, %v254
        %v267 = vadd.f32 %v266, %v257
        %v268 = vadd.f32 %v267, %v260
        %v269 = vrot.slane %v268, 4
        %v270 = vadd.f32 %v268, %v269
        %v271 = vrot.slane %v270, 2
        %v272 = vadd.f32 %v270, %v271
        %v273 = vrot.slane %v272, 1
        %v274 = vadd.f32 %v272, %v273
        %275 = vst [vmem:[%s175] sm:$0x1] %v274
        %v276 = vmul.f32 %v239, %v239
        %v277 = vmul.f32 %v242, %v242
        %v278 = vmul.f32 %v245, %v245
        %v279 = vmul.f32 %v248, %v248
        %v280 = vmul.f32 %v251, %v251
        %v281 = vmul.f32 %v254, %v254
        %v282 = vmul.f32 %v257, %v257
        %v283 = vmul.f32 %v260, %v260
        %v284 = vadd.f32 %v276, %v277
        %v285 = vadd.f32 %v284, %v278
        %v286 = vadd.f32 %v285, %v279
        %v287 = vadd.f32 %v286, %v280
        %v288 = vadd.f32 %v287, %v281
        %v289 = vadd.f32 %v288, %v282
        %v290 = vadd.f32 %v289, %v283
        %v291 = vrot.slane %v290, 4
        %v292 = vadd.f32 %v290, %v291
        %v293 = vrot.slane %v292, 2
        %v294 = vadd.f32 %v292, %v293
        %v295 = vrot.slane %v294, 1
        %v296 = vadd.f32 %v294, %v295
        %297 = vst [vmem:[%s175 + $0x1] sm:$0x1] %v296
        %298 = vst [vmem:[%s168] sm:$0xff] %v239
        %299 = vst [vmem:[%s168 + $0x8] sm:$0xff] %v242
        %300 = vst [vmem:[%s168 + $0x10] sm:$0xff] %v245
        %301 = vst [vmem:[%s168 + $0x18] sm:$0xff] %v248
        %302 = vst [vmem:[%s168 + $0x20] sm:$0xff] %v251
        %303 = vst [vmem:[%s168 + $0x28] sm:$0xff] %v254
        %304 = vst [vmem:[%s168 + $0x30] sm:$0xff] %v257
        %305 = vst [vmem:[%s168 + $0x38] sm:$0xff] %v260
        %s306 = sand.u32 %s76, 1
        %s307 = scalar_lea.sflag [#allocation3], %s306
        %s308 = sand.u32 %s76, 1
        %s309 = smul.addr %s308, 64
        %s310 = scalar_lea.vmem [#allocation2], %s309
        %s311 = sand.u32 %s102, 1
        %s312 = scalar_lea.sflag [#allocation5], %s311
        %s313 = sand.u32 %s102, 1
        %s314 = smul.addr %s313, 2
        %s315 = scalar_lea.vmem [#allocation4], %s314
        // Predicated region
        $region29: #{tpu_custom_call.1} parent=27 // pred_check
          %p316 = pneg %p86
        $region30: #{tpu_custom_call.1} parent=27 // pred_check_branch
          %318 = sbr.rel (%p316) target = $region32
        $region31: #{tpu_custom_call.1} parent=27 // pred_region
          %s319 = smul.u32 8, %s21
          %321 = vsyncadd %s307, 0
          %s322 = smul.addr %s319, 8
          %s323 = scalar_lea.hbm %s2, %s322
          %s324 = sshll.u32 %s310, 4
          %s325 = int_to_ptr.vmem [resolvable:$true] %s324
          %s326 = sshll.u32 %s323, 4
          %s327 = int_to_ptr.hbm [resolvable:$true] %s326
          %332 = dma.vmem_to_hbm [thread:$0]  %s325, 1024, %s327, %s307, 128, 128, 8
        $region32: #{tpu_custom_call.1} parent=27 // pred_fallthru
          _
        // Predicated region
        $region33: #{tpu_custom_call.1} parent=27 // pred_check
          %p333 = pneg %p112
        $region34: #{tpu_custom_call.1} parent=27 // pred_check_branch
          %335 = sbr.rel (%p333) target = $region36
        $region35: #{tpu_custom_call.1} parent=27 // pred_region
          %337 = vsyncadd %s312, 0
          %s338 = smul.addr %s21, 2
          %s339 = scalar_lea.hbm %s3, %s338
          %s341 = sshll.u32 %s315, 4
          %s342 = int_to_ptr.vmem [resolvable:$true] %s341
          %s343 = sshll.u32 %s339, 4
          %s344 = int_to_ptr.hbm [resolvable:$true] %s343
          %346 = dma.vmem_to_hbm [thread:$0]  %s342, 32, %s344, %s312
        $region36: #{tpu_custom_call.1} parent=27 // pred_fallthru
          _
      $region28: #{tpu_custom_call.1} parent=5 // pred_fallthru
        _
      %p347 = scmp.le.s32.totalorder 2, %s16
      // Predicated region
      $region37: #{tpu_custom_call.1} parent=5 // pred_check
        %p348 = pneg %p347
      $region38: #{tpu_custom_call.1} parent=5 // pred_check_branch
        %350 = sbr.rel (%p348) target = $region40
      $region39: #{tpu_custom_call.1} parent=5 // pred_region
        %s351 = ssub.s32 %s16, 2
        // Predicated region
        $region41: #{tpu_custom_call.1} parent=39 // pred_check
          %p352 = pneg %p92
        $region42: #{tpu_custom_call.1} parent=39 // pred_check_branch
          %354 = sbr.rel (%p352) target = $region44
        $region43: #{tpu_custom_call.1} parent=39 // pred_region
          %s355 = sand.u32 %s77, 1
          %s356 = scalar_lea.sflag [#allocation3], %s355
          %s357 = sand.u32 %s77, 1
          %s358 = smul.addr %s357, 64
          %s359 = scalar_lea.vmem [#allocation2], %s358
          %361 = dma.done %s356, 1024
        $region44: #{tpu_custom_call.1} parent=39 // pred_fallthru
          _
        // Predicated region
        $region45: #{tpu_custom_call.1} parent=39 // pred_check
          %p362 = pneg %p118
        $region46: #{tpu_custom_call.1} parent=39 // pred_check_branch
          %364 = sbr.rel (%p362) target = $region48
        $region47: #{tpu_custom_call.1} parent=39 // pred_region
          %s365 = sand.u32 %s103, 1
          %s366 = scalar_lea.sflag [#allocation5], %s365
          %s367 = sand.u32 %s103, 1
          %s368 = smul.addr %s367, 2
          %s369 = scalar_lea.vmem [#allocation4], %s368
          %371 = dma.done %s366, 32
        $region48: #{tpu_custom_call.1} parent=39 // pred_fallthru
          _
      $region40: #{tpu_custom_call.1} parent=5 // pred_fallthru
        _
    $region6: #{tpu_custom_call.1} parent=1 // loop_footer
      %s20 = sadd.s32 1, %s16
    $region7: #{tpu_custom_call.1} parent=1 // loop_footer_branch
      %15 = sbr.rel target = $region3
    $region8: #{tpu_custom_call.1} parent=1 // loop_exit
      _
    %372 = vsyncpa [#allocation3], 1
    %s373 = scalar_lea.sflag [#allocation3], 1
    %374 = vsyncpa %s373, 1
    %375 = vsyncpa [#allocation5], 1
    %s376 = scalar_lea.sflag [#allocation5], 1
    %377 = vsyncpa %s376, 1

</llo_original>
